<compile_context>
chip_gen: v7x
topology: tpu7x:2x2x1
jax: 0.10.0
libtpu: 0.0.40
codegen_flags: <defaults>
</compile_context>

<pallas_src>
import functools
import math

import jax
import jax.numpy as jnp
from jax.experimental import pallas as pl
from jax.experimental.pallas import tpu as pltpu


def _round_up(v, m):
    return ((v + m - 1) // m) * m


# --------------------------------------------------------------------------
# Pass 1: fused projection.  ha = x @ [W | W@att_stack] -> split into
#   h_aug (bf16, per-head [h | 1] layout) and a_all (f32 logits).
# --------------------------------------------------------------------------
def _proj_kernel(x_ref, wcat_ref, haug_ref, a_ref, *, heads, out_ch):
    # x_ref:    [T, F_in]          bf16
    # wcat_ref: [F_in, H*C + 2H]   bf16
    # haug_ref: [T, H*(C+1)]       bf16 out  (per head: [h_head | 1])
    # a_ref:    [T, 2H]            f32  out  (cols [0:H]=a_src, [H:2H]=a_dst)
    hc = heads * out_ch
    ha = jnp.dot(x_ref[...], wcat_ref[...], preferred_element_type=jnp.float32)
    a_ref[...] = ha[:, hc:]
    ones = jnp.ones((ha.shape[0], 1), jnp.float32)
    cols = []
    for hd in range(heads):
        cols.append(ha[:, hd * out_ch:(hd + 1) * out_ch])
        cols.append(ones)                       # ones column -> softmax denom via MXU
    haug_ref[...] = jnp.concatenate(cols, axis=1).astype(haug_ref.dtype)


# --------------------------------------------------------------------------
# Pass 2: tiled attention, online softmax over compacted (non-empty) src tiles
# --------------------------------------------------------------------------
def _gat_attn_kernel(tile_ids_ref, counts_ref, adj_ref, haug_ref, asrct_ref,
                     adst_ref, bias_ref, out_ref, state_ref, *,
                     heads, out_ch, slope):
    # tile_ids_ref: SMEM [n_dst*max_steps] int32  (used only by index_maps)
    # counts_ref:   SMEM [n_dst]           int32  (#non-empty src tiles per dst tile)
    # adj_ref:   [TD, TS]        int8   adj[dst, src] != 0 iff edge src->dst
    # haug_ref:  [TS, H*(C+1)]   bf16   per head: [h | 1]
    # asrct_ref: [H, TS]         f32    per-head src logits (pre-transposed)
    # adst_ref:  [TD, H]         f32    per-head dst logits
    # bias_ref:  [1, H*C]        f32
    # out_ref:   [TD, H*C]       f32
    # state_ref: [TD, H*(C+1)+H] f32    per head [acc | l], then m per head
    del tile_ids_ref
    di = pl.program_id(0)
    si = pl.program_id(1)
    w_head = out_ch + 1
    hw = heads * w_head
    td = state_ref.shape[0]

    @pl.when(si == 0)
    def _init():
        state_ref[...] = jnp.concatenate(
            [jnp.zeros((td, hw), jnp.float32),
             jnp.full((td, heads), -1e30, jnp.float32)], axis=1)

    @pl.when(si < counts_ref[di])                 # skip padded (duplicate) steps
    def _compute():
        mask = adj_ref[...].astype(jnp.int32) > 0          # [TD, TS]
        h_aug = haug_ref[...]                               # [TS, H*(C+1)] bf16
        a_dst = adst_ref[...]                               # [TD, H]
        a_srct = asrct_ref[...]                             # [H, TS]
        state = state_ref[...]
        m_all = state[:, hw:]                               # [TD, H]
        neg_inf = jnp.float32(-jnp.inf)

        pieces, new_ms = [], []
        for hd in range(heads):                             # heads is small: unroll
            e = a_dst[:, hd:hd + 1] + a_srct[hd:hd + 1, :]  # [TD, TS]
            e = jnp.maximum(e, slope * e)                   # LeakyReLU (slope < 1)
            e = jnp.where(mask, e, neg_inf)                 # mask non-edges
            m_prev = m_all[:, hd:hd + 1]
            m_cur = jnp.maximum(m_prev, jnp.max(e, axis=1, keepdims=True))
            alpha = jnp.exp(m_prev - m_cur)                 # f32, [TD,1] (tiny)
            # bf16 exp: runs on the bf16 EUP path (v6e/v7x), masked lanes -> 0.
            p = jnp.exp((e - m_cur).astype(jnp.bfloat16))   # [TD, TS] bf16
            # MXU: [acc_delta | l_delta] in one matmul (ones column folds the sum).
            pd = jnp.dot(p, h_aug[:, hd * w_head:(hd + 1) * w_head],
                         preferred_element_type=jnp.float32)  # [TD, C+1]
            prev = state[:, hd * w_head:(hd + 1) * w_head]     # [acc | l]
            pieces.append(alpha * prev + pd)
            new_ms.append(m_cur)
        # single merged store per step (one vst instead of 3 narrow masked stores)
        state_ref[...] = jnp.concatenate(pieces + new_ms, axis=1)

    @pl.when(si == pl.num_programs(1) - 1)
    def _finalize():
        state = state_ref[...]
        outs = []
        for hd in range(heads):
            blk = state[:, hd * w_head:(hd + 1) * w_head]
            l_safe = jnp.maximum(blk[:, out_ch:out_ch + 1], jnp.float32(1e-30))
            outs.append(blk[:, :out_ch] * pl.reciprocal(l_safe, approx=True))
        out_ref[...] = jnp.concatenate(outs, axis=1) + bias_ref[...]


# --------------------------------------------------------------------------
# Wrapper
# --------------------------------------------------------------------------
def gat_layer_pallas(x, adj, W, att_src, att_dst, bias, *, heads, out_ch, slope,
                     tile_dst=256, tile_src=2048):
    """GAT forward. adj[dst, src] != 0 iff edge src->dst (self-loops included).

    NOTE: the tile-occupancy preprocessing concretizes a host scalar, so this
    wrapper is not jit-wrappable as a whole (the pallas_calls inside are).
    Default tiles target v7x's 64 MiB VMEM; v5e/v6e (128 MiB) can use
    tile_dst=512 as well.
    """
    N, f_in = x.shape
    hc = heads * out_ch
    w_head = out_ch + 1
    hw = heads * w_head
    slope = float(slope)

    # tile_src multiple of 128 (lanes); tile_dst multiple of 32 (int8 sublanes).
    tile_src = max(128, min(tile_src, _round_up(N, 128)))
    tile_dst = _round_up(max(32, min(tile_dst, tile_src)), 32)
    n_pad = _round_up(N, math.lcm(tile_dst, tile_src))
    n_dst_tiles = n_pad // tile_dst
    n_src_tiles = n_pad // tile_src

    # Adjacency streamed as int8; padded directly in the target dtype
    # (no f32 padded intermediate in HBM).
    adj_i8 = jnp.pad((adj != 0).astype(jnp.int8),
                     ((0, n_pad - N), (0, n_pad - N)))

    # ---- sparsity preprocessing: per dst tile, compacted non-empty src tiles ----
    occ = jnp.any(adj_i8.reshape(n_dst_tiles, tile_dst,
                                 n_src_tiles, tile_src) != 0, axis=(1, 3))
    counts = jnp.sum(occ, axis=1).astype(jnp.int32)             # [n_dst_tiles]
    counts_host = jax.device_get(counts)
    max_steps = max(int(counts_host.max()), 1)
    work_tiles = max(int(counts_host.sum()), 1)
    order = jnp.argsort(jnp.logical_not(occ), axis=1, stable=True).astype(jnp.int32)
    step_idx = jnp.minimum(jnp.arange(max_steps, dtype=jnp.int32)[None, :],
                           jnp.maximum(counts - 1, 0)[:, None])
    # padded steps repeat the last valid tile id (same block index -> no extra DMA)
    tile_ids = jnp.take_along_axis(order, step_idx, axis=1).reshape(-1)

    # ---- projection operands (pre-cast bf16; Wcat fuses h and all logits) ----
    x_p = jnp.pad(x, ((0, n_pad - N), (0, 0))).astype(jnp.bfloat16)
    a_stack = jnp.zeros((hc, 2 * heads), jnp.float32)
    for hd in range(heads):
        a_stack = a_stack.at[hd * out_ch:(hd + 1) * out_ch, hd].set(att_src[hd])
        a_stack = a_stack.at[hd * out_ch:(hd + 1) * out_ch, heads + hd].set(att_dst[hd])
    w32 = W.astype(jnp.float32)
    wcat = jnp.concatenate([w32, w32 @ a_stack], axis=1).astype(jnp.bfloat16)
    bias2d = bias.reshape(1, hc).astype(jnp.float32)

    # ---- pass 1: projection ----
    tile_p = tile_src                      # divides n_pad by construction
    h_aug, a_all = pl.pallas_call(
        functools.partial(_proj_kernel, heads=heads, out_ch=out_ch),
        out_shape=(jax.ShapeDtypeStruct((n_pad, hw), jnp.bfloat16),
                   jax.ShapeDtypeStruct((n_pad, 2 * heads), jnp.float32)),
        grid_spec=pltpu.PrefetchScalarGridSpec(
            num_scalar_prefetch=0,
            grid=(n_pad // tile_p,),
            in_specs=[pl.BlockSpec((tile_p, f_in), lambda i: (i, 0)),
                      pl.BlockSpec((f_in, hc + 2 * heads), lambda i: (0, 0))],
            out_specs=[pl.BlockSpec((tile_p, hw), lambda i: (i, 0)),
                       pl.BlockSpec((tile_p, 2 * heads), lambda i: (i, 0))]),
        compiler_params=pltpu.CompilerParams(
            dimension_semantics=("parallel",),
            vmem_limit_bytes=32 * 1024 * 1024),
        cost_estimate=pl.CostEstimate(
            flops=int(2 * n_pad * f_in * (hc + 2 * heads)),
            transcendentals=0,
            bytes_accessed=int(2 * n_pad * f_in + 2 * f_in * (hc + 2 * heads)
                               + 2 * n_pad * hw + 8 * n_pad * heads)),
    )(x_p, wcat)

    a_src_t = a_all[:, :heads].T          # [H, n_pad]  (row-vector layout, no
    a_dst = a_all[:, heads:]              # [n_pad, H]   in-kernel transpose)

    # ---- pass 2: tiled attention + aggregation over non-empty src tiles ----
    ms = max_steps
    out_pad = pl.pallas_call(
        functools.partial(_gat_attn_kernel, heads=heads, out_ch=out_ch,
                          slope=slope),
        out_shape=jax.ShapeDtypeStruct((n_pad, hc), jnp.float32),
        grid_spec=pltpu.PrefetchScalarGridSpec(
            num_scalar_prefetch=2,
            grid=(n_dst_tiles, max_steps),
            in_specs=[
                pl.BlockSpec((tile_dst, tile_src),
                             lambda di, si, tid, cnt: (di, tid[di * ms + si])),  # adj
                pl.BlockSpec((tile_src, hw),
                             lambda di, si, tid, cnt: (tid[di * ms + si], 0)),   # h_aug
                pl.BlockSpec((heads, tile_src),
                             lambda di, si, tid, cnt: (0, tid[di * ms + si])),   # a_src^T
                pl.BlockSpec((tile_dst, heads),
                             lambda di, si, tid, cnt: (di, 0)),                  # a_dst
                pl.BlockSpec((1, hc),
                             lambda di, si, tid, cnt: (0, 0)),                   # bias
            ],
            out_specs=pl.BlockSpec((tile_dst, hc),
                                   lambda di, si, tid, cnt: (di, 0)),
            scratch_shapes=[pltpu.VMEM((tile_dst, hw + heads), jnp.float32)]),
        compiler_params=pltpu.CompilerParams(
            dimension_semantics=("parallel", "arbitrary"),
            vmem_limit_bytes=48 * 1024 * 1024),
        cost_estimate=pl.CostEstimate(
            flops=int(work_tiles * tile_dst * tile_src * heads
                      * (2 * (out_ch + 1) + 6)),
            transcendentals=int(work_tiles * tile_dst * tile_src * heads),
            bytes_accessed=int(work_tiles * (tile_dst * tile_src
                                             + 2 * tile_src * hw)
                               + 4 * n_pad * hc)),
    )(tile_ids, counts, adj_i8, h_aug, a_src_t, a_dst, bias2d)

    return out_pad[:N]


# --------------------------------------------------------------------------
# Pure-JAX reference (f32)
# --------------------------------------------------------------------------
def gat_layer_reference(x, adj, W, att_src, att_dst, bias, *, heads, out_ch, slope):
    N = x.shape[0]
    h = (x @ W).reshape(N, heads, out_ch)
    a_src = jnp.einsum('nhc,hc->nh', h, att_src)
    a_dst = jnp.einsum('nhc,hc->nh', h, att_dst)
    e = a_dst[:, None, :] + a_src[None, :, :]           # [N_dst, N_src, H]
    e = jnp.where(e > 0, e, slope * e)
    mask = adj[:, :, None] > 0
    e = jnp.where(mask, e, -1e30)
    p = jnp.exp(e - jnp.max(e, axis=1, keepdims=True)) * mask
    attn = p / jnp.sum(p, axis=1, keepdims=True)
    out = jnp.einsum('nmh,mhc->nhc', attn, h)
    return out.reshape(N, heads * out_ch) + bias[None, :]


if __name__ == "__main__":
    # Small deterministic problem consistent with GATLayer.forward(x, edges).
    N = 200             # number of graph nodes (exercises a multi-tile grid below)
    in_channels = 16
    out_channels = 16
    heads = 2
    concat = True       # output dim = heads * out_channels
    leaky_slope = 0.2
    knn_value = 8       # each node gets knn_value incoming edges

    key = jax.random.PRNGKey(0)
    k_x, k_w, k_as, k_ad, k_b, k_e = jax.random.split(key, 6)

    x = jax.random.normal(k_x, (N, in_channels), dtype=jnp.float32)

    # Deterministic kNN-style edge list: edges[0] = src nodes, edges[1] = dst nodes.
    src = jax.random.randint(k_e, (N, knn_value), 0, N)
    dst = jnp.broadcast_to(jnp.arange(N)[:, None], (N, knn_value))
    edges = jnp.stack([src.reshape(-1), dst.reshape(-1)], axis=0)  # [2, E]

    # Densify into an adjacency mask (dst rows, src cols) + self-loops
    # (GATConv default add_self_loops=True).
    adj = jnp.zeros((N, N), dtype=jnp.float32)
    adj = adj.at[edges[1], edges[0]].set(1.0)
    adj = adj.at[jnp.arange(N), jnp.arange(N)].set(1.0)

    # Deterministic parameter init (GATConv parameter shapes).
    glorot_w = (6.0 / (in_channels + heads * out_channels)) ** 0.5
    W = jax.random.uniform(k_w, (in_channels, heads * out_channels),
                           minval=-glorot_w, maxval=glorot_w, dtype=jnp.float32)
    glorot_a = (6.0 / (1 + out_channels)) ** 0.5
    att_src = jax.random.uniform(k_as, (heads, out_channels),
                                 minval=-glorot_a, maxval=glorot_a, dtype=jnp.float32)
    att_dst = jax.random.uniform(k_ad, (heads, out_channels),
                                 minval=-glorot_a, maxval=glorot_a, dtype=jnp.float32)
    bias = jax.random.normal(k_b, (heads * out_channels,), dtype=jnp.float32) * 0.01

    out = gat_layer_pallas(x, adj, W, att_src, att_dst, bias,
                           heads=heads, out_ch=out_channels, slope=leaky_slope,
                           tile_dst=64, tile_src=128)   # small tiles -> multi-tile grid
    out = jax.block_until_ready(out)

    ref = gat_layer_reference(x, adj, W, att_src, att_dst, bias,
                              heads=heads, out_ch=out_channels, slope=leaky_slope)
    assert out.shape == (N, heads * out_channels)
    # bf16 MXU / bf16-exp operands + approx reciprocal -> bf16-scale tolerance.
    assert jnp.allclose(out, ref, atol=5e-2, rtol=5e-2), "mismatch vs JAX reference"

    print("KERNEL_OK")
</pallas_src>

<mosaic_0001>
module attributes {stable_mosaic.version = 11 : i64} {
  func.func @_proj_kernel(%arg0: i32, %arg1: memref<128x16xbf16, #tpu.memory_space<vmem>>, %arg2: memref<16x36xbf16, #tpu.memory_space<vmem>>, %arg3: memref<128x34xbf16, #tpu.memory_space<vmem>>, %arg4: memref<128x4xf32, #tpu.memory_space<vmem>>) attributes {dimension_semantics = [#tpu.dimension_semantics<parallel>], iteration_bounds = array<i64: 2>, scalar_prefetch = 0 : i64, scratch_operands = 0 : i64, tpu.core_type = #tpu.core_type<tc>, window_params = [{transform_indices = @transform_0, window_bounds = array<i64: 128, 16>}, {pipeline_mode = #tpu.pipeline_mode<synchronous>, transform_indices = @transform_1, window_bounds = array<i64: 16, 36>}, {transform_indices = @transform_2, window_bounds = array<i64: 128, 34>}, {transform_indices = @transform_3, window_bounds = array<i64: 128, 4>}]} {
    %c0 = arith.constant 0 : index
    %c0_0 = arith.constant 0 : index
    %0 = vector.load %arg1[%c0, %c0_0] : memref<128x16xbf16, #tpu.memory_space<vmem>>, vector<128x16xbf16>
    %c0_1 = arith.constant 0 : index
    %c0_2 = arith.constant 0 : index
    %1 = vector.load %arg2[%c0_1, %c0_2] : memref<16x36xbf16, #tpu.memory_space<vmem>>, vector<16x36xbf16>
    %cst = arith.constant dense<0.000000e+00> : vector<128x36xf32>
    %2 = tpu.matmul %0, %1, %cst {dimension_numbers = #tpu.dot_dimension_numbers<[1], [0], [0], [1], [0, 0, 1, 1], [], []>} : vector<128x16xbf16>, vector<16x36xbf16>, vector<128x36xf32> -> vector<128x36xf32>
    %3 = vector.extract_strided_slice %2 {offsets = [0, 32], sizes = [128, 4], strides = [1, 1]} : vector<128x36xf32> to vector<128x4xf32>
    %c0_3 = arith.constant 0 : index
    %c0_4 = arith.constant 0 : index
    %4 = vector.load %arg4[%c0_3, %c0_4] : memref<128x4xf32, #tpu.memory_space<vmem>>, vector<128x4xf32>
    tpu.vector_store %arg4[%c0_3, %c0_4], %3 {strides = array<i32>} : memref<128x4xf32, #tpu.memory_space<vmem>>, vector<128x4xf32>,
    %cst_5 = arith.constant 1.000000e+00 : f32
    %5 = vector.broadcast %cst_5 : f32 to vector<128x1xf32>
    %6 = vector.extract_strided_slice %2 {offsets = [0, 0], sizes = [128, 16], strides = [1, 1]} : vector<128x36xf32> to vector<128x16xf32>
    %7 = vector.extract_strided_slice %2 {offsets = [0, 16], sizes = [128, 16], strides = [1, 1]} : vector<128x36xf32> to vector<128x16xf32>
    %8 = tpu.concatenate %6, %5, %7, %5 in 1 : vector<128x16xf32>, vector<128x1xf32>, vector<128x16xf32>, vector<128x1xf32> -> vector<128x34xf32>
    %9 = arith.truncf %8 : vector<128x34xf32> to vector<128x34xbf16>
    %c0_6 = arith.constant 0 : index
    %c0_7 = arith.constant 0 : index
    %10 = vector.load %arg3[%c0_6, %c0_7] : memref<128x34xbf16, #tpu.memory_space<vmem>>, vector<128x34xbf16>
    tpu.vector_store %arg3[%c0_6, %c0_7], %9 {strides = array<i32>} : memref<128x34xbf16, #tpu.memory_space<vmem>>, vector<128x34xbf16>,
    return
  }
  func.func @transform_0(%arg0: i32) -> (i32, i32) {
    %c0_i32 = arith.constant 0 : i32
    %c0_i32_0 = arith.constant 0 : i32
    return %arg0, %c0_i32 : i32, i32
  }
  func.func @transform_1(%arg0: i32) -> (i32, i32) {
    %c0_i32 = arith.constant 0 : i32
    %c0_i32_0 = arith.constant 0 : i32
    %c0_i32_1 = arith.constant 0 : i32
    return %c0_i32, %c0_i32_0 : i32, i32
  }
  func.func @transform_2(%arg0: i32) -> (i32, i32) {
    %c0_i32 = arith.constant 0 : i32
    %c0_i32_0 = arith.constant 0 : i32
    return %arg0, %c0_i32 : i32, i32
  }
  func.func @transform_3(%arg0: i32) -> (i32, i32) {
    %c0_i32 = arith.constant 0 : i32
    %c0_i32_0 = arith.constant 0 : i32
    return %arg0, %c0_i32 : i32, i32
  }
}

</mosaic_0001>

<llo_original>
// kernel: tpu_custom_call.1
$region0: #{tpu_custom_call.1}
  #allocation0 [shape = 'u32[]', space=smem, size = 0x4, offset = 0x4, fixed_abs, tag = 'smem constant byte address 0x4 - core index']
  #allocation1 [shape = 'u32[144,128]{1,0:T(1,128)}', space=vmem, size = 0x12000, scoped, tag = 'internal scratch']
  %s0 = inlined_call_operand.vmem [shape: bf16[256,16], index: 0, kind: input, shape index: {}]
  %s1 = inlined_call_operand.vmem [shape: bf16[16,36], index: 1, kind: input, shape index: {}]
  %s2 = inlined_call_operand.vmem [shape: bf16[256,34], index: 2, kind: output, shape index: {0}]
  %s3 = inlined_call_operand.vmem [shape: f32[256,4], index: 3, kind: output, shape index: {1}]
  %4 = xla_tuple %s2, %s3
  %s5 = sld [smem:[#allocation0]]
  $region49: #{tpu_custom_call.1} parent=0
    _
  %s7 = ssub.s32 1, %s5
  %s8 = scalar_select 0, %s7, %s5
  loop: start=0, step=1, limit=4
  $region2: #{tpu_custom_call.1} parent=0 // loop_pre_header
    _
  $region3: #{tpu_custom_call.1} parent=0 // loop_header
    %s10 = sphi 0, %s14
    %p11 = scmp.ge.s32.totalorder %s10, 4
    %s20 = sphi 0, %s22
    %s23 = sphi 0, %s20
    %s24 = sphi 0, %s23
    %s40 = sphi 0, %s24
    %s44 = sphi 0, %s44
    %s46 = sphi 0, %s44
    %s47 = sphi 0, %s46
    %s61 = sphi 0, %s47
    %s67 = sphi 0, %s69
    %s70 = sphi 0, %s67
    %s71 = sphi 0, %s70
    %s87 = sphi 0, %s71
    %s93 = sphi 0, %s95
    %s96 = sphi 0, %s93
    %s97 = sphi 0, %s96
    %s113 = sphi 0, %s97
  $region4: #{tpu_custom_call.1} parent=0 // loop_header_branch
    %13 = sbr.rel (%p11) target = $region8
  $region5: #{tpu_custom_call.1} parent=0 // loop_body
    %s15 = ssub.s32 %s10, 1
    %s16 = ssub.s32 %s10, 2
    %s17 = sadd.s32 %s10, 1
    %s18 = ssub.s32 %s10, %s17
    %p19 = scmp.eq.s32.totalorder %s18, 0
    %s21 = sadd.s32 %s20, 1
    %s22 = scalar_select %p19, %s20, %s21
    %p25 = pneg %p19
    %p26 = scmp.eq.s32.totalorder %s10, 1
    %p27 = por %p25, %p26
    %p28 = scmp.ne.s32.totalorder %s20, %s23
    %p29 = scmp.eq.s32.totalorder %s10, 0
    %p30 = por %p28, %p29
    %p31 = scmp.ne.s32.totalorder %s20, %s23
    %p32 = scmp.eq.s32.totalorder %s15, 1
    %p33 = por %p31, %p32
    %p34 = scmp.ne.s32.totalorder %s23, %s24
    %p35 = scmp.eq.s32.totalorder %s15, 0
    %p36 = por %p34, %p35
    %p37 = scmp.ne.s32.totalorder %s23, %s24
    %p38 = scmp.eq.s32.totalorder %s16, 1
    %p39 = por %p37, %p38
    %p41 = scmp.ne.s32.totalorder %s24, %s40
    %p42 = scmp.eq.s32.totalorder %s16, 0
    %p43 = por %p41, %p42
    %s45 = sadd.s32 %s44, 1
    %p48 = scmp.eq.s32.totalorder %s10, 1
    %p49 = scmp.ne.s32.totalorder %s44, %s46
    %p50 = scmp.eq.s32.totalorder %s10, 0
    %p51 = por %p49, %p50
    %p52 = scmp.ne.s32.totalorder %s44, %s46
    %p53 = scmp.eq.s32.totalorder %s15, 1
    %p54 = por %p52, %p53
    %p55 = scmp.ne.s32.totalorder %s46, %s47
    %p56 = scmp.eq.s32.totalorder %s15, 0
    %p57 = por %p55, %p56
    %p58 = scmp.ne.s32.totalorder %s46, %s47
    %p59 = scmp.eq.s32.totalorder %s16, 1
    %p60 = por %p58, %p59
    %p62 = scmp.ne.s32.totalorder %s47, %s61
    %p63 = scmp.eq.s32.totalorder %s16, 0
    %p64 = por %p62, %p63
    %s65 = ssub.s32 %s10, %s17
    %p66 = scmp.eq.s32.totalorder %s65, 0
    %s68 = sadd.s32 %s67, 1
    %s69 = scalar_select %p66, %s67, %s68
    %p72 = pneg %p66
    %p73 = scmp.eq.s32.totalorder %s10, 1
    %p74 = por %p72, %p73
    %p75 = scmp.ne.s32.totalorder %s67, %s70
    %p76 = scmp.eq.s32.totalorder %s10, 0
    %p77 = por %p75, %p76
    %p78 = scmp.ne.s32.totalorder %s67, %s70
    %p79 = scmp.eq.s32.totalorder %s15, 1
    %p80 = por %p78, %p79
    %p81 = scmp.ne.s32.totalorder %s70, %s71
    %p82 = scmp.eq.s32.totalorder %s15, 0
    %p83 = por %p81, %p82
    %p84 = scmp.ne.s32.totalorder %s70, %s71
    %p85 = scmp.eq.s32.totalorder %s16, 1
    %p86 = por %p84, %p85
    %p88 = scmp.ne.s32.totalorder %s71, %s87
    %p89 = scmp.eq.s32.totalorder %s16, 0
    %p90 = por %p88, %p89
    %s91 = ssub.s32 %s10, %s17
    %p92 = scmp.eq.s32.totalorder %s91, 0
    %s94 = sadd.s32 %s93, 1
    %s95 = scalar_select %p92, %s93, %s94
    %p98 = pneg %p92
    %p99 = scmp.eq.s32.totalorder %s10, 1
    %p100 = por %p98, %p99
    %p101 = scmp.ne.s32.totalorder %s93, %s96
    %p102 = scmp.eq.s32.totalorder %s10, 0
    %p103 = por %p101, %p102
    %p104 = scmp.ne.s32.totalorder %s93, %s96
    %p105 = scmp.eq.s32.totalorder %s15, 1
    %p106 = por %p104, %p105
    %p107 = scmp.ne.s32.totalorder %s96, %s97
    %p108 = scmp.eq.s32.totalorder %s15, 0
    %p109 = por %p107, %p108
    %p110 = scmp.ne.s32.totalorder %s96, %s97
    %p111 = scmp.eq.s32.totalorder %s16, 1
    %p112 = por %p110, %p111
    %p114 = scmp.ne.s32.totalorder %s97, %s113
    %p115 = scmp.eq.s32.totalorder %s16, 0
    %p116 = por %p114, %p115
    %p117 = scmp.le.s32.totalorder 1, %s10
    %p118 = scmp.lt.s32.totalorder %s10, 3
    %p119 = pnand %p117, %p118
    %p120 = pneg %p119
    // Predicated region
    $region9: #{tpu_custom_call.1} parent=5 // pred_check
      _
    $region10: #{tpu_custom_call.1} parent=5 // pred_check_branch
      %122 = sbr.rel (%p119) target = $region12
    $region11: #{tpu_custom_call.1} parent=5 // pred_region
      %s123 = ssub.s32 %s10, 1
      // Predicated region
      $region13: #{tpu_custom_call.1} parent=11 // pred_check
        %p124 = pneg %p57
      $region14: #{tpu_custom_call.1} parent=11 // pred_check_branch
        %126 = sbr.rel (%p124) target = $region16
      $region15: #{tpu_custom_call.1} parent=11 // pred_region
        _
      $region16: #{tpu_custom_call.1} parent=11 // pred_fallthru
        _
    $region12: #{tpu_custom_call.1} parent=5 // pred_fallthru
      _
    %p127 = scmp.lt.s32.totalorder %s10, 2
    // Predicated region
    $region17: #{tpu_custom_call.1} parent=5 // pred_check
      %p128 = pneg %p127
    $region18: #{tpu_custom_call.1} parent=5 // pred_check_branch
      %130 = sbr.rel (%p128) target = $region20
    $region19: #{tpu_custom_call.1} parent=5 // pred_region
      // Predicated region
      $region21: #{tpu_custom_call.1} parent=19 // pred_check
        %p131 = pneg %p30
      $region22: #{tpu_custom_call.1} parent=19 // pred_check_branch
        %133 = sbr.rel (%p131) target = $region24
      $region23: #{tpu_custom_call.1} parent=19 // pred_region
        %s134 = smul.u32 16, %s10
        %p135 = scmp.lt.s32.totalorder %s134, 31
        %s136 = scalar_select %p135, %s134, 31
        %s137 = smul.addr %s136, 4
        %s138 = scalar_lea.vmem %s0, %s137
        %s139 = smul.u32 16, %s10
      $region24: #{tpu_custom_call.1} parent=19 // pred_fallthru
        _
    $region20: #{tpu_custom_call.1} parent=5 // pred_fallthru
      _
    %p140 = scmp.le.s32.totalorder 1, %s10
    %p141 = scmp.lt.s32.totalorder %s10, 3
    %p142 = pnand %p140, %p141
    %p143 = pneg %p142
    // Predicated region
    $region25: #{tpu_custom_call.1} parent=5 // pred_check
      _
    $region26: #{tpu_custom_call.1} parent=5 // pred_check_branch
      %145 = sbr.rel (%p142) target = $region28
    $region27: #{tpu_custom_call.1} parent=5 // pred_region
      %s146 = ssub.s32 %s10, 1
      %s147 = smul.u32 16, %s15
      %p148 = scmp.lt.s32.totalorder %s147, 31
      %s149 = scalar_select %p148, %s147, 31
      %s150 = smul.addr %s149, 4
      %s151 = scalar_lea.vmem %s0, %s150
      %p152 = pneg %p36
      %p153 = pneg %p33
      %p154 = pneg %p57
      %p155 = pneg %p54
      %p156 = pneg %p83
      %p157 = pneg %p80
      %s158 = smul.u32 16, %s15
      %p159 = scmp.lt.s32.totalorder %s158, 31
      %s160 = scalar_select %p159, %s158, 31
      %s161 = smul.addr %s160, 4
      %s162 = scalar_lea.vmem %s2, %s161
      %p163 = pneg %p109
      %p164 = pneg %p106
      %s165 = smul.u32 16, %s15
      %p166 = scmp.lt.s32.totalorder %s165, 31
      %s167 = scalar_select %p166, %s165, 31
      %s168 = smul.addr %s167, 8
      %s169 = scalar_lea.vmem %s3, %s168
      %s170 = smul.u32 16, %s15
      %p171 = scmp.lt.s32.totalorder %s170, 31
      %s172 = scalar_select %p171, %s170, 31
      %s173 = smul.addr %s172, 4
      %s174 = scalar_lea.vmem %s0, %s173
      %s175 = smul.u32 16, %s15
      %s176 = smul.u32 16, %s15
      %p177 = scmp.lt.s32.totalorder %s176, 31
      %s178 = scalar_select %p177, %s176, 31
      %s179 = smul.addr %s178, 4
      %s180 = scalar_lea.vmem %s2, %s179
      %s181 = smul.u32 16, %s15
      %s182 = smul.u32 16, %s15
      %p183 = scmp.lt.s32.totalorder %s182, 31
      %s184 = scalar_select %p183, %s182, 31
      %s185 = smul.addr %s184, 8
      %s186 = scalar_lea.vmem %s3, %s185
      %s187 = smul.u32 16, %s15
      %v189 = vld [vmem:[%s174] sm:$0xf]
      %v190 = vld [vmem:[%s174 + $0x4] sm:$0xf]
      %v191 = vld [vmem:[%s174 + $0x8] sm:$0xf]
      %v192 = vld [vmem:[%s174 + $0xc] sm:$0xf]
      %v193 = vld [vmem:[%s174 + $0x10] sm:$0xf]
      %v194 = vld [vmem:[%s174 + $0x14] sm:$0xf]
      %v195 = vld [vmem:[%s174 + $0x18] sm:$0xf]
      %v196 = vld [vmem:[%s174 + $0x1c] sm:$0xf]
      %v197 = vld [vmem:[%s174 + $0x20] sm:$0xf]
      %v198 = vld [vmem:[%s174 + $0x24] sm:$0xf]
      %v199 = vld [vmem:[%s174 + $0x28] sm:$0xf]
      %v200 = vld [vmem:[%s174 + $0x2c] sm:$0xf]
      %v201 = vld [vmem:[%s174 + $0x30] sm:$0xf]
      %v202 = vld [vmem:[%s174 + $0x34] sm:$0xf]
      %v203 = vld [vmem:[%s174 + $0x38] sm:$0xf]
      %v204 = vld [vmem:[%s174 + $0x3c] sm:$0xf]
      %v205 = vld [vmem:[%s1] sm:$0xf]
      %v206 = vld [vmem:[%s1 + $0x4] sm:$0xf]
      %v223 = vunpack.c.l.b16 %v189
      %v224 = vunpack.c.l.b16 %v190
      %v225 = vunpack.c.l.b16 %v191
      %v226 = vunpack.c.l.b16 %v192
      %v227 = vunpack.c.l.b16 %v193
      %v228 = vunpack.c.l.b16 %v194
      %v229 = vunpack.c.l.b16 %v195
      %v230 = vunpack.c.l.b16 %v196
      %v231 = vunpack.c.l.b16 %v197
      %v232 = vunpack.c.l.b16 %v198
      %v233 = vunpack.c.l.b16 %v199
      %v234 = vunpack.c.l.b16 %v200
      %v235 = vunpack.c.l.b16 %v201
      %v236 = vunpack.c.l.b16 %v202
      %v237 = vunpack.c.l.b16 %v203
      %v238 = vunpack.c.l.b16 %v204
      %v239 = vpack.c.b16 %v224, %v223
      %v240 = vpack.c.b16 %v226, %v225
      %v241 = vpack.c.b16 %v228, %v227
      %v242 = vpack.c.b16 %v230, %v229
      %v243 = vpack.c.b16 %v232, %v231
      %v244 = vpack.c.b16 %v234, %v233
      %v245 = vpack.c.b16 %v236, %v235
      %v246 = vpack.c.b16 %v238, %v237
      %v249 = vunpack.c.l.b16 %v205
      %v250 = vunpack.c.l.b16 %v206
      %v251 = vpack.c.b16 %v250, %v249
      %vm253 = vcmask 130048
      %v255 = vsel %vm253, %v239, 0
      %v258 = vsel %vm253, %v240, 0
      %v261 = vsel %vm253, %v241, 0
      %v264 = vsel %vm253, %v242, 0
      %v267 = vsel %vm253, %v243, 0
      %v270 = vsel %vm253, %v244, 0
      %v273 = vsel %vm253, %v245, 0
      %v276 = vsel %vm253, %v246, 0
      %278 = vmatprep.subr.bf16.mxu0 0
      %279 = vmatpush1.bf16.msra.mxu0 %v251
      %280 = vmatprep.subr.bf16.mxu0 0
      %281 = vmatpush1.bf16.msra.mxu0 0
      %282 = vmatprep.subr.bf16.mxu0 0
      %283 = vmatpush1.bf16.msra.mxu0 0
      %284 = vmatprep.subr.bf16.mxu0 0
      %285 = vmatpush1.bf16.msra.mxu0 0
      %286 = vmatprep.subr.bf16.mxu0 0
      %287 = vmatpush1.bf16.msra.mxu0 0
      %288 = vmatprep.subr.bf16.mxu0 0
      %289 = vmatpush1.bf16.msra.mxu0 0
      %290 = vmatprep.subr.bf16.mxu0 0
      %291 = vmatpush1.bf16.msra.mxu0 0
      %292 = vmatprep.subr.bf16.mxu0 0
      %293 = vmatpush1.bf16.msra.mxu0 0
      %294 = vmatprep.subr.bf16.mxu0 0
      %295 = vmatpush1.bf16.msra.mxu0 0
      %296 = vmatprep.subr.bf16.mxu0 0
      %297 = vmatpush1.bf16.msra.mxu0 0
      %298 = vmatprep.subr.bf16.mxu0 0
      %299 = vmatpush1.bf16.msra.mxu0 0
      %300 = vmatprep.subr.bf16.mxu0 0
      %301 = vmatpush1.bf16.msra.mxu0 0
      %302 = vmatprep.subr.bf16.mxu0 0
      %303 = vmatpush1.bf16.msra.mxu0 0
      %304 = vmatprep.subr.bf16.mxu0 0
      %305 = vmatpush1.bf16.msra.mxu0 0
      %306 = vmatprep.subr.bf16.mxu0 0
      %307 = vmatpush1.bf16.msra.mxu0 0
      %308 = vmatprep.subr.bf16.mxu0 0
      %309 = vmatpush1.bf16.msra.mxu0 0
      %310 = vmatprep.mubr.bf16.mxu0 0
      %311 = vmatmul.mubr.bf16.gmra.mrb[0].mxu0 %v255
      %v312 = vpop.f32.mrb[0].mxu0
      %v313 = vadd.f32 0.0, %v312
      %v314 = vpop.f32.mrb[0].mxu0
      %v315 = vpop.f32.mrb[0].mxu0
      %v316 = vadd.f32 0.0, %v315
      %v317 = vpop.f32.mrb[0].mxu0
      %318 = vmatprep.mubr.bf16.mxu0 0
      %319 = vmatmul.mubr.bf16.gmra.mrb[0].mxu0 %v258
      %v320 = vpop.f32.mrb[0].mxu0
      %v321 = vadd.f32 0.0, %v320
      %v322 = vpop.f32.mrb[0].mxu0
      %v323 = vpop.f32.mrb[0].mxu0
      %v324 = vadd.f32 0.0, %v323
      %v325 = vpop.f32.mrb[0].mxu0
      %326 = vmatprep.mubr.bf16.mxu0 0
      %327 = vmatmul.mubr.bf16.gmra.mrb[0].mxu0 %v261
      %v328 = vpop.f32.mrb[0].mxu0
      %v329 = vadd.f32 0.0, %v328
      %v330 = vpop.f32.mrb[0].mxu0
      %v331 = vpop.f32.mrb[0].mxu0
      %v332 = vadd.f32 0.0, %v331
      %v333 = vpop.f32.mrb[0].mxu0
      %334 = vmatprep.mubr.bf16.mxu0 0
      %335 = vmatmul.mubr.bf16.gmra.mrb[0].mxu0 %v264
      %v336 = vpop.f32.mrb[0].mxu0
      %v337 = vadd.f32 0.0, %v336
      %v338 = vpop.f32.mrb[0].mxu0
      %v339 = vpop.f32.mrb[0].mxu0
      %v340 = vadd.f32 0.0, %v339
      %v341 = vpop.f32.mrb[0].mxu0
      %342 = vmatprep.mubr.bf16.mxu0 0
      %343 = vmatmul.mubr.bf16.gmra.mrb[0].mxu0 %v267
      %v344 = vpop.f32.mrb[0].mxu0
      %v345 = vadd.f32 0.0, %v344
      %v346 = vpop.f32.mrb[0].mxu0
      %v347 = vpop.f32.mrb[0].mxu0
      %v348 = vadd.f32 0.0, %v347
      %v349 = vpop.f32.mrb[0].mxu0
      %350 = vmatprep.mubr.bf16.mxu0 0
      %351 = vmatmul.mubr.bf16.gmra.mrb[0].mxu0 %v270
      %v352 = vpop.f32.mrb[0].mxu0
      %v353 = vadd.f32 0.0, %v352
      %v354 = vpop.f32.mrb[0].mxu0
      %v355 = vpop.f32.mrb[0].mxu0
      %v356 = vadd.f32 0.0, %v355
      %v357 = vpop.f32.mrb[0].mxu0
      %358 = vmatprep.mubr.bf16.mxu0 0
      %359 = vmatmul.mubr.bf16.gmra.mrb[0].mxu0 %v273
      %v360 = vpop.f32.mrb[0].mxu0
      %v361 = vadd.f32 0.0, %v360
      %v362 = vpop.f32.mrb[0].mxu0
      %v363 = vpop.f32.mrb[0].mxu0
      %v364 = vadd.f32 0.0, %v363
      %v365 = vpop.f32.mrb[0].mxu0
      %366 = vmatprep.mubr.bf16.mxu0 0
      %367 = vmatmul.mubr.bf16.gmra.mrb[0].mxu0 %v276
      %v368 = vpop.f32.mrb[0].mxu0
      %v369 = vadd.f32 0.0, %v368
      %v370 = vpop.f32.mrb[0].mxu0
      %v371 = vpop.f32.mrb[0].mxu0
      %v372 = vadd.f32 0.0, %v371
      %v373 = vpop.f32.mrb[0].mxu0
      %374 = vdwg.mxu0
      %391 = vrot.lane.b32.xlu0 %v313, 96
      %v392 = vpop.permute.xlu0 %391
      %393 = vrot.lane.b32.xlu0 %v316, 96
      %v394 = vpop.permute.xlu0 %393
      %395 = vrot.lane.b32.xlu0 %v321, 96
      %v396 = vpop.permute.xlu0 %395
      %397 = vrot.lane.b32.xlu0 %v324, 96
      %v398 = vpop.permute.xlu0 %397
      %399 = vrot.lane.b32.xlu0 %v329, 96
      %v400 = vpop.permute.xlu0 %399
      %401 = vrot.lane.b32.xlu0 %v332, 96
      %v402 = vpop.permute.xlu0 %401
      %403 = vrot.lane.b32.xlu0 %v337, 96
      %v404 = vpop.permute.xlu0 %403
      %405 = vrot.lane.b32.xlu0 %v340, 96
      %v406 = vpop.permute.xlu0 %405
      %407 = vrot.lane.b32.xlu0 %v345, 96
      %v408 = vpop.permute.xlu0 %407
      %409 = vrot.lane.b32.xlu0 %v348, 96
      %v410 = vpop.permute.xlu0 %409
      %411 = vrot.lane.b32.xlu0 %v353, 96
      %v412 = vpop.permute.xlu0 %411
      %413 = vrot.lane.b32.xlu0 %v356, 96
      %v414 = vpop.permute.xlu0 %413
      %415 = vrot.lane.b32.xlu0 %v361, 96
      %v416 = vpop.permute.xlu0 %415
      %417 = vrot.lane.b32.xlu0 %v364, 96
      %v418 = vpop.permute.xlu0 %417
      %419 = vrot.lane.b32.xlu0 %v369, 96
      %v420 = vpop.permute.xlu0 %419
      %421 = vrot.lane.b32.xlu0 %v372, 96
      %v422 = vpop.permute.xlu0 %421
      %vm439 = vcmask 31744
      %440 = vst.msk [vmem:[%s186] sm:$0xff] %vm439, %v392
      %441 = vst.msk [vmem:[%s186 + $0x8] sm:$0xff] %vm439, %v394
      %442 = vst.msk [vmem:[%s186 + $0x10] sm:$0xff] %vm439, %v396
      %443 = vst.msk [vmem:[%s186 + $0x18] sm:$0xff] %vm439, %v398
      %444 = vst.msk [vmem:[%s186 + $0x20] sm:$0xff] %vm439, %v400
      %445 = vst.msk [vmem:[%s186 + $0x28] sm:$0xff] %vm439, %v402
      %446 = vst.msk [vmem:[%s186 + $0x30] sm:$0xff] %vm439, %v404
      %447 = vst.msk [vmem:[%s186 + $0x38] sm:$0xff] %vm439, %v406
      %448 = vst.msk [vmem:[%s186 + $0x40] sm:$0xff] %vm439, %v408
      %449 = vst.msk [vmem:[%s186 + $0x48] sm:$0xff] %vm439, %v410
      %450 = vst.msk [vmem:[%s186 + $0x50] sm:$0xff] %vm439, %v412
      %451 = vst.msk [vmem:[%s186 + $0x58] sm:$0xff] %vm439, %v414
      %452 = vst.msk [vmem:[%s186 + $0x60] sm:$0xff] %vm439, %v416
      %453 = vst.msk [vmem:[%s186 + $0x68] sm:$0xff] %vm439, %v418
      %454 = vst.msk [vmem:[%s186 + $0x70] sm:$0xff] %vm439, %v420
      %455 = vst.msk [vmem:[%s186 + $0x78] sm:$0xff] %vm439, %v422
      %456 = vrot.lane.b32.xlu0 %v313, 1
      %v457 = vpop.permute.xlu0 %456
      %458 = vrot.lane.b32.xlu0 %v316, 1
      %v459 = vpop.permute.xlu0 %458
      %460 = vrot.lane.b32.xlu0 %v321, 1
      %v461 = vpop.permute.xlu0 %460
      %462 = vrot.lane.b32.xlu0 %v324, 1
      %v463 = vpop.permute.xlu0 %462
      %464 = vrot.lane.b32.xlu0 %v329, 1
      %v465 = vpop.permute.xlu0 %464
      %466 = vrot.lane.b32.xlu0 %v332, 1
      %v467 = vpop.permute.xlu0 %466
      %468 = vrot.lane.b32.xlu0 %v337, 1
      %v469 = vpop.permute.xlu0 %468
      %470 = vrot.lane.b32.xlu0 %v340, 1
      %v471 = vpop.permute.xlu0 %470
      %472 = vrot.lane.b32.xlu0 %v345, 1
      %v473 = vpop.permute.xlu0 %472
      %474 = vrot.lane.b32.xlu0 %v348, 1
      %v475 = vpop.permute.xlu0 %474
      %476 = vrot.lane.b32.xlu0 %v353, 1
      %v477 = vpop.permute.xlu0 %476
      %478 = vrot.lane.b32.xlu0 %v356, 1
      %v479 = vpop.permute.xlu0 %478
      %480 = vrot.lane.b32.xlu0 %v361, 1
      %v481 = vpop.permute.xlu0 %480
      %482 = vrot.lane.b32.xlu0 %v364, 1
      %v483 = vpop.permute.xlu0 %482
      %484 = vrot.lane.b32.xlu0 %v369, 1
      %v485 = vpop.permute.xlu0 %484
      %486 = vrot.lane.b32.xlu0 %v372, 1
      %v487 = vpop.permute.xlu0 %486
      %v504 = vsel %vm253, %v313, 1.0
      %v505 = vsel %vm253, %v316, 1.0
      %v506 = vsel %vm253, %v321, 1.0
      %v507 = vsel %vm253, %v324, 1.0
      %v508 = vsel %vm253, %v329, 1.0
      %v509 = vsel %vm253, %v332, 1.0
      %v510 = vsel %vm253, %v337, 1.0
      %v511 = vsel %vm253, %v340, 1.0
      %v512 = vsel %vm253, %v345, 1.0
      %v513 = vsel %vm253, %v348, 1.0
      %v514 = vsel %vm253, %v353, 1.0
      %v515 = vsel %vm253, %v356, 1.0
      %v516 = vsel %vm253, %v361, 1.0
      %v517 = vsel %vm253, %v364, 1.0
      %v518 = vsel %vm253, %v369, 1.0
      %v519 = vsel %vm253, %v372, 1.0
      %vm520 = vcmask 138240
      %v521 = vsel %vm520, %v504, %v457
      %v522 = vsel %vm520, %v505, %v459
      %v523 = vsel %vm520, %v506, %v461
      %v524 = vsel %vm520, %v507, %v463
      %v525 = vsel %vm520, %v508, %v465
      %v526 = vsel %vm520, %v509, %v467
      %v527 = vsel %vm520, %v510, %v469
      %v528 = vsel %vm520, %v511, %v471
      %v529 = vsel %vm520, %v512, %v473
      %v530 = vsel %vm520, %v513, %v475
      %v531 = vsel %vm520, %v514, %v477
      %v532 = vsel %vm520, %v515, %v479
      %v533 = vsel %vm520, %v516, %v481
      %v534 = vsel %vm520, %v517, %v483
      %v535 = vsel %vm520, %v518, %v485
      %v536 = vsel %vm520, %v519, %v487
      %vm537 = vcmask 269312
      %v538 = vsel %vm537, %v521, 1.0
      %v539 = vsel %vm537, %v522, 1.0
      %v540 = vsel %vm537, %v523, 1.0
      %v541 = vsel %vm537, %v524, 1.0
      %v542 = vsel %vm537, %v525, 1.0
      %v543 = vsel %vm537, %v526, 1.0
      %v544 = vsel %vm537, %v527, 1.0
      %v545 = vsel %vm537, %v528, 1.0
      %v546 = vsel %vm537, %v529, 1.0
      %v547 = vsel %vm537, %v530, 1.0
      %v548 = vsel %vm537, %v531, 1.0
      %v549 = vsel %vm537, %v532, 1.0
      %v550 = vsel %vm537, %v533, 1.0
      %v551 = vsel %vm537, %v534, 1.0
      %v552 = vsel %vm537, %v535, 1.0
      %v553 = vsel %vm537, %v536, 1.0
      %v554 = vpack.c.bf16 %v539, %v538
      %v555 = vpack.c.bf16 %v541, %v540
      %v556 = vpack.c.bf16 %v543, %v542
      %v557 = vpack.c.bf16 %v545, %v544
      %v558 = vpack.c.bf16 %v547, %v546
      %v559 = vpack.c.bf16 %v549, %v548
      %v560 = vpack.c.bf16 %v551, %v550
      %v561 = vpack.c.bf16 %v553, %v552
      %v570 = vunpack.c.l.b16 %v554
      %v571 = vunpack.c.h.b16 %v554
      %v572 = vunpack.c.l.b16 %v555
      %v573 = vunpack.c.h.b16 %v555
      %v574 = vunpack.c.l.b16 %v556
      %v575 = vunpack.c.h.b16 %v556
      %v576 = vunpack.c.l.b16 %v557
      %v577 = vunpack.c.h.b16 %v557
      %v578 = vunpack.c.l.b16 %v558
      %v579 = vunpack.c.h.b16 %v558
      %v580 = vunpack.c.l.b16 %v559
      %v581 = vunpack.c.h.b16 %v559
      %v582 = vunpack.c.l.b16 %v560
      %v583 = vunpack.c.h.b16 %v560
      %v584 = vunpack.c.l.b16 %v561
      %v585 = vunpack.c.h.b16 %v561
      %v586 = vpack.c.b16 %v570, %v570
      %v587 = vpack.c.b16 %v571, %v571
      %v588 = vpack.c.b16 %v572, %v572
      %v589 = vpack.c.b16 %v573, %v573
      %v590 = vpack.c.b16 %v574, %v574
      %v591 = vpack.c.b16 %v575, %v575
      %v592 = vpack.c.b16 %v576, %v576
      %v593 = vpack.c.b16 %v577, %v577
      %v594 = vpack.c.b16 %v578, %v578
      %v595 = vpack.c.b16 %v579, %v579
      %v596 = vpack.c.b16 %v580, %v580
      %v597 = vpack.c.b16 %v581, %v581
      %v598 = vpack.c.b16 %v582, %v582
      %v599 = vpack.c.b16 %v583, %v583
      %v600 = vpack.c.b16 %v584, %v584
      %v601 = vpack.c.b16 %v585, %v585
      %vm618 = vcmask 273408
      %619 = vst.msk [vmem:[%s180] sm:$0xf] %vm618, %v586
      %620 = vst.msk [vmem:[%s180 + $0x4] sm:$0xf] %vm618, %v587
      %621 = vst.msk [vmem:[%s180 + $0x8] sm:$0xf] %vm618, %v588
      %622 = vst.msk [vmem:[%s180 + $0xc] sm:$0xf] %vm618, %v589
      %623 = vst.msk [vmem:[%s180 + $0x10] sm:$0xf] %vm618, %v590
      %624 = vst.msk [vmem:[%s180 + $0x14] sm:$0xf] %vm618, %v591
      %625 = vst.msk [vmem:[%s180 + $0x18] sm:$0xf] %vm618, %v592
      %626 = vst.msk [vmem:[%s180 + $0x1c] sm:$0xf] %vm618, %v593
      %627 = vst.msk [vmem:[%s180 + $0x20] sm:$0xf] %vm618, %v594
      %628 = vst.msk [vmem:[%s180 + $0x24] sm:$0xf] %vm618, %v595
      %629 = vst.msk [vmem:[%s180 + $0x28] sm:$0xf] %vm618, %v596
      %630 = vst.msk [vmem:[%s180 + $0x2c] sm:$0xf] %vm618, %v597
      %631 = vst.msk [vmem:[%s180 + $0x30] sm:$0xf] %vm618, %v598
      %632 = vst.msk [vmem:[%s180 + $0x34] sm:$0xf] %vm618, %v599
      %633 = vst.msk [vmem:[%s180 + $0x38] sm:$0xf] %vm618, %v600
      %634 = vst.msk [vmem:[%s180 + $0x3c] sm:$0xf] %vm618, %v601
      %s635 = smul.u32 16, %s15
      %p636 = scmp.lt.s32.totalorder %s635, 31
      %s637 = scalar_select %p636, %s635, 31
      %s638 = smul.addr %s637, 4
      %s639 = scalar_lea.vmem %s2, %s638
      %s640 = smul.u32 16, %s15
      %p641 = scmp.lt.s32.totalorder %s640, 31
      %s642 = scalar_select %p641, %s640, 31
      %s643 = smul.addr %s642, 8
      %s644 = scalar_lea.vmem %s3, %s643
      // Predicated region
      $region29: #{tpu_custom_call.1} parent=27 // pred_check
        %p645 = pneg %p80
      $region30: #{tpu_custom_call.1} parent=27 // pred_check_branch
        %647 = sbr.rel (%p645) target = $region32
      $region31: #{tpu_custom_call.1} parent=27 // pred_region
        %s648 = smul.u32 16, %s15
      $region32: #{tpu_custom_call.1} parent=27 // pred_fallthru
        _
      // Predicated region
      $region33: #{tpu_custom_call.1} parent=27 // pred_check
        %p649 = pneg %p106
      $region34: #{tpu_custom_call.1} parent=27 // pred_check_branch
        %651 = sbr.rel (%p649) target = $region36
      $region35: #{tpu_custom_call.1} parent=27 // pred_region
        %s652 = smul.u32 16, %s15
      $region36: #{tpu_custom_call.1} parent=27 // pred_fallthru
        _
    $region28: #{tpu_custom_call.1} parent=5 // pred_fallthru
      _
    %p653 = scmp.le.s32.totalorder 2, %s10
    // Predicated region
    $region37: #{tpu_custom_call.1} parent=5 // pred_check
      %p654 = pneg %p653
    $region38: #{tpu_custom_call.1} parent=5 // pred_check_branch
      %656 = sbr.rel (%p654) target = $region40
    $region39: #{tpu_custom_call.1} parent=5 // pred_region
      %s657 = ssub.s32 %s10, 2
      // Predicated region
      $region41: #{tpu_custom_call.1} parent=39 // pred_check
        %p658 = pneg %p86
      $region42: #{tpu_custom_call.1} parent=39 // pred_check_branch
        %660 = sbr.rel (%p658) target = $region44
      $region43: #{tpu_custom_call.1} parent=39 // pred_region
        %s661 = smul.u32 16, %s16
        %p662 = scmp.lt.s32.totalorder %s661, 31
        %s663 = scalar_select %p662, %s661, 31
        %s664 = smul.addr %s663, 4
        %s665 = scalar_lea.vmem %s2, %s664
      $region44: #{tpu_custom_call.1} parent=39 // pred_fallthru
        _
      // Predicated region
      $region45: #{tpu_custom_call.1} parent=39 // pred_check
        %p666 = pneg %p112
      $region46: #{tpu_custom_call.1} parent=39 // pred_check_branch
        %668 = sbr.rel (%p666) target = $region48
      $region47: #{tpu_custom_call.1} parent=39 // pred_region
        %s669 = smul.u32 16, %s16
        %p670 = scmp.lt.s32.totalorder %s669, 31
        %s671 = scalar_select %p670, %s669, 31
        %s672 = smul.addr %s671, 8
        %s673 = scalar_lea.vmem %s3, %s672
      $region48: #{tpu_custom_call.1} parent=39 // pred_fallthru
        _
    $region40: #{tpu_custom_call.1} parent=5 // pred_fallthru
      _
  $region6: #{tpu_custom_call.1} parent=0 // loop_footer
    %s14 = sadd.s32 1, %s10
  $region7: #{tpu_custom_call.1} parent=0 // loop_footer_branch
    %9 = sbr.rel target = $region3
  $region8: #{tpu_custom_call.1} parent=0 // loop_exit
    _

</llo_original>
